<compile_context>
chip_gen: v7x
topology: tpu7x:2x2x1
jax: 0.10.0
libtpu: 0.0.40
codegen_flags: <defaults>
</compile_context>

<pallas_src>
import functools

import jax
import jax.numpy as jnp
from jax.experimental import pallas as pl
from jax.experimental.pallas import tpu as pltpu

ALPHA = 0.5
BETA = 0.5
GAMMA = 1.0

_LANE = 128
_SUBLANE = 8
_GRANULE = _SUBLANE * _LANE     # 1024: kernel handles the 1024-aligned prefix
_CHUNK_ROWS = 256               # in-kernel reduction chunk (128 KiB f32)


def _tree_fold(a):
    """Log-depth pairwise sum over axis 0 of an (m, 8, 128) f32 value."""
    m = a.shape[0]
    if m == 1:
        return a[0]
    half = m // 2
    return _tree_fold(a[:half]) + _tree_fold(a[half:])


def _tversky_partial_sums_kernel(x_ref, t_ref, acc_ref, *, block_rows,
                                 steps_per_core, total_steps,
                                 valid_rows_last, ragged, clamped):
    """Accumulate per-core partial sums of [p, t, p*t] (p = sigmoid(x)) into a
    resident (1, 3, 8, 128) f32 output block."""
    c = pl.program_id(0)            # "parallel" core-split axis
    i = pl.program_id(1)            # "arbitrary" reduction axis
    step = c * steps_per_core + i   # logical block index

    @pl.when(i == 0)
    def _():
        acc_ref[...] = jnp.zeros_like(acc_ref)

    def chunk_sums(row_start, rows_in_chunk):
        x = x_ref[pl.ds(row_start, rows_in_chunk), :].astype(jnp.float32)
        t = t_ref[pl.ds(row_start, rows_in_chunk), :].astype(jnp.float32)
        # One EUP op per element: sigmoid(x) == 0.5 * tanh(x / 2) + 0.5.
        p = 0.5 * jnp.tanh(0.5 * x) + 0.5
        nb = rows_in_chunk // _SUBLANE

        def fold(a):
            return _tree_fold(a.reshape(nb, _SUBLANE, _LANE))

        return jnp.stack([fold(p), fold(t), fold(p * t)])

    def accumulate(n_rows):
        # n_rows is static and a multiple of 8.
        n_chunks = n_rows // _CHUNK_ROWS
        rem = n_rows - n_chunks * _CHUNK_ROWS
        if n_chunks > 0:
            def body(j, carry):
                start = pl.multiple_of(j * _CHUNK_ROWS, _CHUNK_ROWS)
                acc_ref[0] += chunk_sums(start, _CHUNK_ROWS)
                return carry
            jax.lax.fori_loop(0, n_chunks, body, 0)
        if rem:
            acc_ref[0] += chunk_sums(n_chunks * _CHUNK_ROWS, rem)

    if ragged:
        @pl.when(step < total_steps - 1)
        def _():
            accumulate(block_rows)

        @pl.when(step == total_steps - 1)
        def _():
            accumulate(valid_rows_last)
    elif clamped:
        # Uneven core split: skip clamped duplicate blocks (free scalar pred).
        @pl.when(step < total_steps)
        def _():
            accumulate(block_rows)
    else:
        accumulate(block_rows)


def _sums_jax(x, t):
    x = x.astype(jnp.float32)
    t = t.astype(jnp.float32)
    p = jax.nn.sigmoid(x)
    return jnp.sum(p), jnp.sum(t), jnp.sum(p * t)


def _kernel_ok_dtype(dt, is_target):
    if dt == jnp.float32 or dt == jnp.bfloat16:
        return True
    if is_target and (dt == jnp.int8 or dt == jnp.uint8 or dt == jnp.int32):
        return True
    return False


def _tpu_defaults():
    kind = ""
    try:
        kind = (getattr(jax.devices()[0], "device_kind", "") or "").lower()
    except Exception:
        pass
    if "v7" in kind:
        return 8192, 2      # 2 TensorCores per chip; 64 MiB VMEM per TC
    if "v6" in kind:
        return 8192, 1
    return 4096, 1          # v5e & unknown: conservative scoped-VMEM footprint


def focal_tversky_loss(inputs, targets, smooth=1.0, alpha=ALPHA, beta=BETA,
                       gamma=GAMMA, block_rows=None, num_cores=None):
    default_rows, default_cores = _tpu_defaults()
    if block_rows is None:
        block_rows = default_rows
    if num_cores is None:
        num_cores = default_cores

    x = inputs.reshape(-1)
    t = targets.reshape(-1)
    # TODO(synk): also pass fp8 logits straight through once upstream uses them.
    if not _kernel_ok_dtype(x.dtype, is_target=False):
        x = x.astype(jnp.float32)
    if not _kernel_ok_dtype(t.dtype, is_target=True):
        t = t.astype(jnp.float32)
    n = x.shape[0]

    # The kernel processes the 1024-aligned prefix; the <=1023-element tail is
    # folded in with plain JAX below -> no full-tensor pad/copy in the wrapper.
    n_main = (n // _GRANULE) * _GRANULE

    if n_main == 0:
        sum_p, sum_t, sum_pt = _sums_jax(x, t)
    else:
        rows = n_main // _LANE                        # multiple of 8
        x2 = (x if n_main == n else x[:n_main]).reshape(rows, _LANE)
        t2 = (t if n_main == n else t[:n_main]).reshape(rows, _LANE)

        block_rows = min(block_rows, rows)
        # Keep a few steps per core in flight so the DMA pipeline stays busy,
        # but never below 256 rows (block stays a multiple of 32, so bf16/int8
        # tiles remain legal).
        desired_steps = 4 * num_cores
        if rows >= desired_steps * 256 and rows // block_rows < desired_steps:
            block_rows = max(256, (rows // desired_steps) // 32 * 32)

        total_steps = pl.cdiv(rows, block_rows)
        num_cores = min(num_cores, total_steps)
        steps_per_core = pl.cdiv(total_steps, num_cores)
        clamped = num_cores * steps_per_core != total_steps
        valid_rows_last = rows - (total_steps - 1) * block_rows
        ragged = valid_rows_last != block_rows

        if clamped:
            def in_index_map(c, i):
                # Overshooting blocks on the last core are clamped onto the
                # last real block; the in-kernel pl.when skips them entirely.
                return (jnp.minimum(c * steps_per_core + i, total_steps - 1), 0)
        else:
            def in_index_map(c, i):
                return (c * steps_per_core + i, 0)

        kernel = functools.partial(
            _tversky_partial_sums_kernel,
            block_rows=block_rows,
            steps_per_core=steps_per_core,
            total_steps=total_steps,
            valid_rows_last=valid_rows_last,
            ragged=ragged,
            clamped=clamped,
        )

        partials = pl.pallas_call(
            kernel,
            out_shape=jax.ShapeDtypeStruct((num_cores, 3, _SUBLANE, _LANE),
                                           jnp.float32),
            grid_spec=pltpu.PrefetchScalarGridSpec(
                num_scalar_prefetch=0,
                grid=(num_cores, steps_per_core),
                in_specs=[
                    pl.BlockSpec((block_rows, _LANE), in_index_map),
                    pl.BlockSpec((block_rows, _LANE), in_index_map),
                ],
                out_specs=pl.BlockSpec((1, 3, _SUBLANE, _LANE),
                                       lambda c, i: (c, 0, 0, 0)),
            ),
            compiler_params=pltpu.CompilerParams(
                dimension_semantics=("parallel", "arbitrary"),
                vmem_limit_bytes=32 * 1024 * 1024),
            cost_estimate=pl.CostEstimate(
                flops=6 * n_main, transcendentals=n_main,
                bytes_accessed=n_main * (x2.dtype.itemsize + t2.dtype.itemsize)),
        )(x2, t2)

        # partials: (num_cores, 3, 8, 128) -> [sum(p), sum(t), sum(p*t)]
        sums = jnp.sum(partials, axis=(0, 2, 3))
        sum_p, sum_t, sum_pt = sums[0], sums[1], sums[2]

        if n_main != n:
            tail_p, tail_t, tail_pt = _sums_jax(x[n_main:], t[n_main:])
            sum_p = sum_p + tail_p
            sum_t = sum_t + tail_t
            sum_pt = sum_pt + tail_pt

    tp = sum_pt
    fp = sum_p - tp            # sum((1 - t) * p)
    fn = sum_t - tp            # sum(t * (1 - p))
    tversky = (tp + smooth) / (tp + alpha * fp + beta * fn + smooth)
    # Clamp: f32 cancellation can push tversky an ulp above 1, which would NaN
    # under a non-integer gamma.
    return jnp.maximum(1.0 - tversky, 0.0) ** gamma


def _reference_loss(inputs, targets, smooth=1.0,
                    alpha=ALPHA, beta=BETA, gamma=GAMMA):
    p = jax.nn.sigmoid(inputs.reshape(-1).astype(jnp.float32))
    t = targets.reshape(-1).astype(jnp.float32)
    TP = jnp.sum(p * t)
    FP = jnp.sum((1.0 - t) * p)
    FN = jnp.sum(t * (1.0 - p))
    tversky = (TP + smooth) / (TP + alpha * FP + beta * FN + smooth)
    return (1.0 - tversky) ** gamma


if __name__ == "__main__":
    key = jax.random.PRNGKey(0)
    k1, k2 = jax.random.split(key)

    # Shapes consistent with a segmentation logits / mask pair (N, C, H, W).
    inputs = jax.random.normal(k1, (2, 4, 16, 16), dtype=jnp.float32)
    targets = (jax.random.uniform(k2, (2, 4, 16, 16)) > 0.5).astype(jnp.float32)

    loss = focal_tversky_loss(inputs, targets, smooth=1.0)
    loss = jax.block_until_ready(loss)

    ref = _reference_loss(inputs, targets, smooth=1.0)
    assert jnp.allclose(loss, ref, rtol=5e-5, atol=1e-6), (loss, ref)

    print("KERNEL_OK")
</pallas_src>

<mosaic_0001>
module attributes {stable_mosaic.version = 11 : i64} {
  func.func @_tversky_partial_sums_kernel(%arg0: i32, %arg1: i32, %arg2: memref<16x128xf32, #tpu.memory_space<vmem>>, %arg3: memref<16x128xf32, #tpu.memory_space<vmem>>, %arg4: memref<1x3x8x128xf32, #tpu.memory_space<vmem>>) attributes {dimension_semantics = [#tpu.dimension_semantics<parallel>, #tpu.dimension_semantics<arbitrary>], iteration_bounds = array<i64: 1, 1>, scalar_prefetch = 0 : i64, scratch_operands = 0 : i64, tpu.core_type = #tpu.core_type<tc>, window_params = [{transform_indices = @transform_0, window_bounds = array<i64: 16, 128>}, {transform_indices = @transform_1, window_bounds = array<i64: 16, 128>}, {transform_indices = @transform_2, window_bounds = array<i64: 1, 3, 8, 128>}]} {
    %c0_i32 = arith.constant 0 : i32
    %0 = arith.cmpi eq, %arg1, %c0_i32 : i32
    %1 = arith.extui %0 : i1 to i32
    %c0_i32_0 = arith.constant 0 : i32
    %2 = arith.cmpi ne, %1, %c0_i32_0 : i32
    scf.if %2 {
      %cst_14 = arith.constant 0.000000e+00 : f32
      %41 = vector.broadcast %cst_14 : f32 to vector<1x3x8x128xf32>
      %c0_15 = arith.constant 0 : index
      %c0_16 = arith.constant 0 : index
      %c0_17 = arith.constant 0 : index
      %c0_18 = arith.constant 0 : index
      %42 = vector.load %arg4[%c0_15, %c0_16, %c0_17, %c0_18] : memref<1x3x8x128xf32, #tpu.memory_space<vmem>>, vector<1x3x8x128xf32>
      tpu.vector_store %arg4[%c0_15, %c0_16, %c0_17, %c0_18], %41 {strides = array<i32>} : memref<1x3x8x128xf32, #tpu.memory_space<vmem>>, vector<1x3x8x128xf32>,
    } else {
    }
    %c0 = arith.constant 0 : index
    %c0_1 = arith.constant 0 : index
    %c0_2 = arith.constant 0 : index
    %c0_3 = arith.constant 0 : index
    %3 = vector.load %arg4[%c0, %c0_1, %c0_2, %c0_3] : memref<1x3x8x128xf32, #tpu.memory_space<vmem>>, vector<1x3x8x128xf32>
    %4 = vector.shape_cast %3 : vector<1x3x8x128xf32> to vector<3x8x128xf32>
    %c0_4 = arith.constant 0 : index
    %c0_5 = arith.constant 0 : index
    %5 = vector.load %arg2[%c0_4, %c0_5] : memref<16x128xf32, #tpu.memory_space<vmem>>, vector<16x128xf32>
    %c0_6 = arith.constant 0 : index
    %c0_7 = arith.constant 0 : index
    %6 = vector.load %arg3[%c0_6, %c0_7] : memref<16x128xf32, #tpu.memory_space<vmem>>, vector<16x128xf32>
    %cst = arith.constant 5.000000e-01 : f32
    %7 = vector.broadcast %cst : f32 to vector<16x128xf32>
    %8 = arith.mulf %7, %5 : vector<16x128xf32>
    %9 = math.tanh %8 : vector<16x128xf32>
    %cst_8 = arith.constant 5.000000e-01 : f32
    %10 = vector.broadcast %cst_8 : f32 to vector<16x128xf32>
    %11 = arith.mulf %10, %9 : vector<16x128xf32>
    %cst_9 = arith.constant 5.000000e-01 : f32
    %12 = vector.broadcast %cst_9 : f32 to vector<16x128xf32>
    %13 = arith.addf %11, %12 : vector<16x128xf32>
    %14 = vector.shape_cast %13 : vector<16x128xf32> to vector<2x8x128xf32>
    %15 = vector.extract_strided_slice %14 {offsets = [0, 0, 0], sizes = [1, 8, 128], strides = [1, 1, 1]} : vector<2x8x128xf32> to vector<1x8x128xf32>
    %16 = vector.shape_cast %15 : vector<1x8x128xf32> to vector<8x128xf32>
    %17 = vector.extract_strided_slice %14 {offsets = [1, 0, 0], sizes = [1, 8, 128], strides = [1, 1, 1]} : vector<2x8x128xf32> to vector<1x8x128xf32>
    %18 = vector.shape_cast %17 : vector<1x8x128xf32> to vector<8x128xf32>
    %19 = arith.addf %16, %18 : vector<8x128xf32>
    %20 = vector.shape_cast %6 : vector<16x128xf32> to vector<2x8x128xf32>
    %21 = vector.extract_strided_slice %20 {offsets = [0, 0, 0], sizes = [1, 8, 128], strides = [1, 1, 1]} : vector<2x8x128xf32> to vector<1x8x128xf32>
    %22 = vector.shape_cast %21 : vector<1x8x128xf32> to vector<8x128xf32>
    %23 = vector.extract_strided_slice %20 {offsets = [1, 0, 0], sizes = [1, 8, 128], strides = [1, 1, 1]} : vector<2x8x128xf32> to vector<1x8x128xf32>
    %24 = vector.shape_cast %23 : vector<1x8x128xf32> to vector<8x128xf32>
    %25 = arith.addf %22, %24 : vector<8x128xf32>
    %26 = arith.mulf %13, %6 : vector<16x128xf32>
    %27 = vector.shape_cast %26 : vector<16x128xf32> to vector<2x8x128xf32>
    %28 = vector.extract_strided_slice %27 {offsets = [0, 0, 0], sizes = [1, 8, 128], strides = [1, 1, 1]} : vector<2x8x128xf32> to vector<1x8x128xf32>
    %29 = vector.shape_cast %28 : vector<1x8x128xf32> to vector<8x128xf32>
    %30 = vector.extract_strided_slice %27 {offsets = [1, 0, 0], sizes = [1, 8, 128], strides = [1, 1, 1]} : vector<2x8x128xf32> to vector<1x8x128xf32>
    %31 = vector.shape_cast %30 : vector<1x8x128xf32> to vector<8x128xf32>
    %32 = arith.addf %29, %31 : vector<8x128xf32>
    %33 = vector.shape_cast %19 : vector<8x128xf32> to vector<1x8x128xf32>
    %34 = vector.shape_cast %25 : vector<8x128xf32> to vector<1x8x128xf32>
    %35 = vector.shape_cast %32 : vector<8x128xf32> to vector<1x8x128xf32>
    %36 = tpu.concatenate %33, %34, %35 in 0 : vector<1x8x128xf32>, vector<1x8x128xf32>, vector<1x8x128xf32> -> vector<3x8x128xf32>
    %37 = arith.addf %4, %36 : vector<3x8x128xf32>
    %c0_10 = arith.constant 0 : index
    %c0_11 = arith.constant 0 : index
    %c0_12 = arith.constant 0 : index
    %c0_13 = arith.constant 0 : index
    %38 = vector.load %arg4[%c0_10, %c0_11, %c0_12, %c0_13] : memref<1x3x8x128xf32, #tpu.memory_space<vmem>>, vector<1x3x8x128xf32>
    %39 = vector.shape_cast %38 : vector<1x3x8x128xf32> to vector<3x8x128xf32>
    %40 = vector.shape_cast %37 : vector<3x8x128xf32> to vector<1x3x8x128xf32>
    tpu.vector_store %arg4[%c0_10, %c0_11, %c0_12, %c0_13], %40 {strides = array<i32>} : memref<1x3x8x128xf32, #tpu.memory_space<vmem>>, vector<1x3x8x128xf32>,
    return
  }
  func.func @transform_0(%arg0: i32, %arg1: i32) -> (i32, i32) {
    %c1_i32 = arith.constant 1 : i32
    %0 = arith.muli %arg0, %c1_i32 : i32
    %1 = arith.addi %0, %arg1 : i32
    %c0_i32 = arith.constant 0 : i32
    %c0_i32_0 = arith.constant 0 : i32
    return %1, %c0_i32 : i32, i32
  }
  func.func @transform_1(%arg0: i32, %arg1: i32) -> (i32, i32) {
    %c1_i32 = arith.constant 1 : i32
    %0 = arith.muli %arg0, %c1_i32 : i32
    %1 = arith.addi %0, %arg1 : i32
    %c0_i32 = arith.constant 0 : i32
    %c0_i32_0 = arith.constant 0 : i32
    return %1, %c0_i32 : i32, i32
  }
  func.func @transform_2(%arg0: i32, %arg1: i32) -> (i32, i32, i32, i32) {
    %c0_i32 = arith.constant 0 : i32
    %c0_i32_0 = arith.constant 0 : i32
    %c0_i32_1 = arith.constant 0 : i32
    %c0_i32_2 = arith.constant 0 : i32
    return %arg0, %c0_i32, %c0_i32_0, %c0_i32_1 : i32, i32, i32, i32
  }
}

</mosaic_0001>

<llo_original>
// kernel: tpu_custom_call.1
$region0: #{tpu_custom_call.1}
  #allocation0 [shape = 'u32[]', space=smem, size = 0x4, offset = 0x4, fixed_abs, tag = 'smem constant byte address 0x4 - core index']
  #allocation1 [shape = 'u32[144,128]{1,0:T(1,128)}', space=vmem, size = 0x12000, scoped, tag = 'internal scratch']
  %s0 = inlined_call_operand.hbm [shape: f32[16,128], index: 0, kind: input, shape index: {}]
  %s1 = inlined_call_operand.hbm [shape: f32[16,128], index: 1, kind: input, shape index: {}]
  %s2 = inlined_call_operand.hbm [shape: f32[1,3,8,128], index: 2, kind: output, shape index: {}]
  %s3 = sld [smem:[#allocation0]]
  $region30: #{tpu_custom_call.1} parent=0
    _
  %s5 = ssub.s32 1, %s3
  %s6 = scalar_select 0, %s5, %s3
  $region1: #{tpu_custom_call.1} parent=0
    #allocation2 [shape = 'u8[8192]{0}', space=vmem, size = 0x2000, scoped, tag = 'input window, operand 0, single buffered']
    #allocation3 [shape = 's32[1]{0}', space=sflag, size = 0x4, scoped, tag = 'scoped memory for tpu_custom_call.1']
    #allocation4 [shape = 's32[1]{0}', space=sflag, size = 0x4, scoped, tag = 'scoped memory for tpu_custom_call.1']
    #allocation5 [shape = 'u8[8192]{0}', space=vmem, size = 0x2000, scoped, tag = 'input window, operand 1, single buffered']
    #allocation6 [shape = 's32[1]{0}', space=sflag, size = 0x4, scoped, tag = 'scoped memory for tpu_custom_call.1']
    #allocation7 [shape = 'u8[12288]{0}', space=vmem, size = 0x3000, scoped, tag = 'output window, operand 0, single buffered']
    %7 = vsyncpa [#allocation3], 0
    %8 = vsyncpa [#allocation6], 0
    %9 = vsyncpa [#allocation4], 0
    // Predicated region
    $region2: #{tpu_custom_call.1} parent=1 // pred_check
      _
    $region3: #{tpu_custom_call.1} parent=1 // pred_check_branch
      %11 = sbr.rel (0) target = $region5
    $region4: #{tpu_custom_call.1} parent=1 // pred_region
      %s12 = sadd.s32 0, 0
      %s13 = smul.u32 2, %s12
      %s15 = ssub.s32 256, 256
      %16 = vsyncadd [#allocation3], %s15
      %s17 = smul.addr %s13, 128
      %s18 = scalar_lea.hbm %s0, %s17
      %s19 = sshll.u32 [#allocation2], 4
      %s20 = int_to_ptr.vmem [resolvable:$true] %s19
      %25 = dma.hbm_to_vmem [thread:$0]  %s18, 256, %s20, [#allocation3], 128, 128, 8
    $region5: #{tpu_custom_call.1} parent=1 // pred_fallthru
      _
    // Predicated region
    $region6: #{tpu_custom_call.1} parent=1 // pred_check
      _
    $region7: #{tpu_custom_call.1} parent=1 // pred_check_branch
      %27 = sbr.rel (0) target = $region9
    $region8: #{tpu_custom_call.1} parent=1 // pred_region
      %s28 = sadd.s32 0, 0
      %s29 = smul.u32 2, %s28
      %s31 = ssub.s32 256, 256
      %32 = vsyncadd [#allocation6], %s31
      %s33 = smul.addr %s29, 128
      %s34 = scalar_lea.hbm %s1, %s33
      %s35 = sshll.u32 [#allocation5], 4
      %s36 = int_to_ptr.vmem [resolvable:$true] %s35
      %41 = dma.hbm_to_vmem [thread:$0]  %s34, 256, %s36, [#allocation6], 128, 128, 8
    $region9: #{tpu_custom_call.1} parent=1 // pred_fallthru
      _
    // Predicated region
    $region10: #{tpu_custom_call.1} parent=1 // pred_check
      _
    $region11: #{tpu_custom_call.1} parent=1 // pred_check_branch
      %43 = sbr.rel (0) target = $region13
    $region12: #{tpu_custom_call.1} parent=1 // pred_region
      %44 = dma.done [#allocation3], 256
    $region13: #{tpu_custom_call.1} parent=1 // pred_fallthru
      _
    // Predicated region
    $region14: #{tpu_custom_call.1} parent=1 // pred_check
      _
    $region15: #{tpu_custom_call.1} parent=1 // pred_check_branch
      %46 = sbr.rel (0) target = $region17
    $region16: #{tpu_custom_call.1} parent=1 // pred_region
      %47 = dma.done [#allocation6], 256
    $region17: #{tpu_custom_call.1} parent=1 // pred_fallthru
      _
    %s48 = sadd.s32 0, 0
    %s49 = smul.u32 2, %s48
    %s50 = sadd.s32 0, 0
    %s51 = smul.u32 2, %s50
    %p52 = scmp.eq.s32.totalorder 0, 0
    // Predicated region
    $region18: #{tpu_custom_call.1} parent=1 // pred_check
      %p53 = pneg %p52
    $region19: #{tpu_custom_call.1} parent=1 // pred_check_branch
      %55 = sbr.rel (%p53) target = $region21
    $region20: #{tpu_custom_call.1} parent=1 // pred_region
      %56 = vst [vmem:[#allocation7] sm:$0xff] 0.0
      %57 = vst [vmem:[#allocation7 + $0x8] sm:$0xff] 0.0
      %58 = vst [vmem:[#allocation7 + $0x10] sm:$0xff] 0.0
    $region21: #{tpu_custom_call.1} parent=1 // pred_fallthru
      _
    %v59 = vld [vmem:[#allocation7] sm:$0xff]
    %v60 = vld [vmem:[#allocation7 + $0x8] sm:$0xff]
    %v61 = vld [vmem:[#allocation7 + $0x10] sm:$0xff]
    %v62 = vld [vmem:[#allocation2] sm:$0xff]
    %v63 = vld [vmem:[#allocation2 + $0x8] sm:$0xff]
    %v64 = vld [vmem:[#allocation5] sm:$0xff]
    %v65 = vld [vmem:[#allocation5 + $0x8] sm:$0xff]
    %v66 = vmul.f32 %v62, 0.5
    %v67 = vmul.f32 %v63, 0.5
    %v68 = vtanh.pop %v66
    %v69 = vtanh.pop %v67
    %v70 = vmul.f32 %v68, 0.5
    %v71 = vmul.f32 %v69, 0.5
    %v72 = vadd.f32 %v70, 0.5
    %v73 = vadd.f32 %v71, 0.5
    %v74 = vadd.f32 %v72, %v73
    %v75 = vadd.f32 %v64, %v65
    %v76 = vmul.f32 %v72, %v64
    %v77 = vmul.f32 %v73, %v65
    %v78 = vadd.f32 %v76, %v77
    %v79 = vadd.f32 %v59, %v74
    %v80 = vadd.f32 %v60, %v75
    %v81 = vadd.f32 %v61, %v78
    %82 = vst [vmem:[#allocation7] sm:$0xff] %v79
    %83 = vst [vmem:[#allocation7 + $0x8] sm:$0xff] %v80
    %84 = vst [vmem:[#allocation7 + $0x10] sm:$0xff] %v81
    // Predicated region
    $region22: #{tpu_custom_call.1} parent=1 // pred_check
      _
    $region23: #{tpu_custom_call.1} parent=1 // pred_check_branch
      %86 = sbr.rel (0) target = $region25
    $region24: #{tpu_custom_call.1} parent=1 // pred_region
      %s88 = ssub.s32 384, 384
      %89 = vsyncadd [#allocation4], %s88
      %s90 = sshll.u32 [#allocation7], 4
      %s91 = int_to_ptr.vmem [resolvable:$true] %s90
      %96 = dma.vmem_to_hbm [thread:$0]  %s91, 384, %s2, [#allocation4], 128, 128, 8
    $region25: #{tpu_custom_call.1} parent=1 // pred_fallthru
      _
    // Predicated region
    $region26: #{tpu_custom_call.1} parent=1 // pred_check
      _
    $region27: #{tpu_custom_call.1} parent=1 // pred_check_branch
      %98 = sbr.rel (0) target = $region29
    $region28: #{tpu_custom_call.1} parent=1 // pred_region
      %99 = dma.done [#allocation4], 384
    $region29: #{tpu_custom_call.1} parent=1 // pred_fallthru
      _
    %100 = vsyncpa [#allocation3], 1
    %101 = vsyncpa [#allocation6], 1
    %102 = vsyncpa [#allocation4], 1

</llo_original>
